<compile_context>
chip_gen: v7x
topology: tpu7x:2x2x1
jax: 0.10.0
libtpu: 0.0.40
codegen_flags: <defaults>
</compile_context>

<pallas_src>
import functools

import jax
import jax.numpy as jnp
from jax.experimental import pallas as pl
from jax.experimental.pallas import tpu as pltpu

# ---------------------------- model constants -------------------------------
PAD_LEN = 5 * 60 * 128          # 38400, as in Net.encode
FRAME = 128                     # conv kernel == stride (patch conv)
N_FRAMES = PAD_LEN // FRAME     # 300 frames per (padded) recording
FEAT_DIM = 128                  # feature dimension ('feat')
PRED_DIM = 2                    # prediction head width ('pred')  # TODO(synk): width unknown
PRED_PAD = 128                  # lane-dense padded prediction width
BT = 8                          # batch elements per grid step (sublane-dense outputs)


# ------------------------- fused Pallas kernel -------------------------------
def fused_net_kernel(x_ref, pool_ref, w1_ref, b1_ref, w2_ref, b2_ref,
                     w3_ref, b3_ref, feat_ref, pred_ref, *, pad_scale):
    """One block of BT batch elements per grid step.

    x_ref    : (BT*S_real, C*128) bf16   channel-interleaved real frames
    pool_ref : (BT, BT*S_real)    f32    block-diagonal mean-pool matrix (1/300 entries)
    Conv (single K=C*128 bf16 matmul, f32 acc) -> ReLU -> pooled mean over the 300-frame
    window (real frames via MXU contraction + analytic ReLU(b1) term for padded frames)
    -> feature head (f32, ReLU) -> padded prediction head (f32, lane dense).
    """
    # patch-conv over real frames: (BT*S, C*128) @ (C*128, FEAT) on the MXU
    ff = jnp.dot(x_ref[...], w1_ref[...], preferred_element_type=jnp.float32)
    ff = jnp.maximum(ff + b1_ref[...], 0.0)                       # (BT*S, FEAT) f32

    # mean over all N_FRAMES frames: real frames via MXU contraction with the 1/300
    # pooling matrix, padded (zero) frames contribute exactly ReLU(b1) each.
    pooled = jnp.dot(pool_ref[...], ff, preferred_element_type=jnp.float32)  # (BT, FEAT)
    pooled = pooled + pad_scale * jnp.maximum(b1_ref[...], 0.0)

    # heads in f32 (tiny matmuls; keeps the pooled mean at full precision)
    feat = jnp.dot(pooled, w2_ref[...], preferred_element_type=jnp.float32)
    feat = jnp.maximum(feat + b2_ref[...], 0.0)                   # (BT, FEAT)
    pred = jnp.dot(feat, w3_ref[...], preferred_element_type=jnp.float32)
    pred = pred + b3_ref[...]                                     # (BT, PRED_PAD)

    feat_ref[...] = feat.astype(feat_ref.dtype)
    pred_ref[...] = pred.astype(pred_ref.dtype)


# ----------------------------- pallas_call glue ------------------------------
def fused_net(xf, params):
    """xf: (B, S_real, C*FRAME) bf16 channel-interleaved real frames."""
    b, s_real, cf = xf.shape

    # pad batch to a multiple of BT so output blocks are sublane-dense (8, 128)
    b_pad = ((b + BT - 1) // BT) * BT
    if b_pad != b:
        xf = jnp.pad(xf, ((0, b_pad - b), (0, 0), (0, 0)))
    rows_per_block = BT * s_real
    x2 = xf.reshape(b_pad * s_real, cf)                           # row-major, no relayout

    # block-diagonal mean-pool matrix: pool[r, r*s_real + s] = 1/N_FRAMES
    rows = jnp.arange(BT)[:, None]
    cols = jnp.arange(rows_per_block)[None, :]
    pool = jnp.where(cols // s_real == rows, 1.0 / N_FRAMES, 0.0).astype(jnp.float32)

    pad_scale = float(N_FRAMES - s_real) / float(N_FRAMES)        # padded-frame weight
    kernel = functools.partial(fused_net_kernel, pad_scale=pad_scale)

    feat, pred = pl.pallas_call(
        kernel,
        out_shape=(
            jax.ShapeDtypeStruct((b_pad, FEAT_DIM), jnp.float32),   # feat
            jax.ShapeDtypeStruct((b_pad, PRED_PAD), jnp.float32),   # lane-dense pred
        ),
        grid_spec=pltpu.PrefetchScalarGridSpec(
            num_scalar_prefetch=0,
            grid=(b_pad // BT,),
            in_specs=[
                pl.BlockSpec((rows_per_block, cf), lambda i: (i, 0)),        # real frames
                pl.BlockSpec((BT, rows_per_block), lambda i: (0, 0)),        # pool matrix
                pl.BlockSpec((cf, FEAT_DIM), lambda i: (0, 0)),              # w1 (C*128, F)
                pl.BlockSpec((1, FEAT_DIM), lambda i: (0, 0)),               # b1
                pl.BlockSpec((FEAT_DIM, FEAT_DIM), lambda i: (0, 0)),        # w2
                pl.BlockSpec((1, FEAT_DIM), lambda i: (0, 0)),               # b2
                pl.BlockSpec((FEAT_DIM, PRED_PAD), lambda i: (0, 0)),        # w3 (padded)
                pl.BlockSpec((1, PRED_PAD), lambda i: (0, 0)),               # b3 (padded)
            ],
            out_specs=[
                pl.BlockSpec((BT, FEAT_DIM), lambda i: (i, 0)),
                pl.BlockSpec((BT, PRED_PAD), lambda i: (i, 0)),
            ],
        ),
        compiler_params=pltpu.CompilerParams(
            dimension_semantics=("parallel",)),   # megacore sharding over batch blocks
    )(x2, pool, params["w1"], params["b1"], params["w2"], params["b2"],
      params["w3"], params["b3"])
    return feat[:b], pred[:b, :PRED_DIM]


# ------------------------------- parameters ----------------------------------
def init_params(in_channels, key=jax.random.PRNGKey(0)):
    k1, k2, k3 = jax.random.split(key, 3)
    # conv weight flattened to (C*FRAME, FEAT): row c*128+n matches the
    # channel-interleaved frame layout produced in net_encode.
    w1 = (jax.random.normal(k1, (in_channels * FRAME, FEAT_DIM), jnp.float32)
          * 0.02).astype(jnp.bfloat16)
    b1 = jnp.zeros((1, FEAT_DIM), jnp.float32)
    w2 = jax.random.normal(k2, (FEAT_DIM, FEAT_DIM), jnp.float32) * 0.05
    b2 = jnp.zeros((1, FEAT_DIM), jnp.float32)
    # prediction head zero-padded to 128 output lanes (lane-dense store);
    # the wrapper slices back to PRED_DIM.
    w3_core = jax.random.normal(k3, (FEAT_DIM, PRED_DIM), jnp.float32) * 0.05
    w3 = jnp.zeros((FEAT_DIM, PRED_PAD), jnp.float32).at[:, :PRED_DIM].set(w3_core)
    b3 = jnp.zeros((1, PRED_PAD), jnp.float32)
    return dict(w1=w1, b1=b1, w2=w2, b2=b2, w3=w3, b3=b3)


# ------------------------------ Net.forward ----------------------------------
def net_encode(x, params):
    """Mirrors Net.encode: permute -> reshape -> pad -> feature module -> (feat, pred).

    The zero padding to 38400 samples is handled analytically inside the kernel
    (padded frames contribute exactly ReLU(b1) to the mean pool), so only real
    samples are ever moved or multiplied.
    """
    batch_size, seqlen, nchan, nsamp = x.shape
    if nsamp % FRAME != 0:
        raise ValueError("nsamp must be a multiple of 128 (physioex sampling frame)")
    total = seqlen * nsamp
    if total > PAD_LEN:
        raise ValueError("sequence longer than the 5*60*128 padded window")
    s_real = total // FRAME                                       # real 128-sample frames

    # channel-interleaved frames: (B, S_real, C*FRAME); a pure reshape when nsamp == 128
    # (the transpose below is a no-op in that case).
    xf = x.reshape(batch_size, seqlen, nchan, nsamp // FRAME, FRAME)
    xf = jnp.transpose(xf, (0, 1, 3, 2, 4))
    xf = xf.reshape(batch_size, s_real, nchan * FRAME).astype(jnp.bfloat16)
    return fused_net(xf, params)


def net_forward(x, params):
    _, pred = net_encode(x, params)
    return pred                                                   # Net.forward returns y


# ---------------------------------- main --------------------------------------
if __name__ == "__main__":
    # input shape consistent with (batch, seqlen, nchan, nsamp)
    B, S, C, N = 2, 8, 4, 128
    key = jax.random.PRNGKey(0)
    x = jax.random.normal(key, (B, S, C, N), jnp.float32)

    params = init_params(in_channels=C)

    fwd = jax.jit(net_forward)
    y = fwd(x, params)
    y = jax.block_until_ready(y)

    assert y.shape == (B, PRED_DIM), y.shape
    assert jnp.all(jnp.isfinite(y))
    print("KERNEL_OK")
</pallas_src>

<mosaic_0001>
module attributes {stable_mosaic.version = 11 : i64} {
  func.func @fused_net_kernel(%arg0: i32, %arg1: memref<64x512xbf16, #tpu.memory_space<vmem>>, %arg2: memref<8x64xf32, #tpu.memory_space<vmem>>, %arg3: memref<512x128xbf16, #tpu.memory_space<vmem>>, %arg4: memref<1x128xf32, #tpu.memory_space<vmem>>, %arg5: memref<128x128xf32, #tpu.memory_space<vmem>>, %arg6: memref<1x128xf32, #tpu.memory_space<vmem>>, %arg7: memref<128x128xf32, #tpu.memory_space<vmem>>, %arg8: memref<1x128xf32, #tpu.memory_space<vmem>>, %arg9: memref<8x128xf32, #tpu.memory_space<vmem>>, %arg10: memref<8x128xf32, #tpu.memory_space<vmem>>) attributes {dimension_semantics = [#tpu.dimension_semantics<parallel>], iteration_bounds = array<i64: 1>, scalar_prefetch = 0 : i64, scratch_operands = 0 : i64, tpu.core_type = #tpu.core_type<tc>, window_params = [{transform_indices = @transform_0, window_bounds = array<i64: 64, 512>}, {pipeline_mode = #tpu.pipeline_mode<synchronous>, transform_indices = @transform_1, window_bounds = array<i64: 8, 64>}, {pipeline_mode = #tpu.pipeline_mode<synchronous>, transform_indices = @transform_2, window_bounds = array<i64: 512, 128>}, {pipeline_mode = #tpu.pipeline_mode<synchronous>, transform_indices = @transform_3, window_bounds = array<i64: 1, 128>}, {pipeline_mode = #tpu.pipeline_mode<synchronous>, transform_indices = @transform_4, window_bounds = array<i64: 128, 128>}, {pipeline_mode = #tpu.pipeline_mode<synchronous>, transform_indices = @transform_5, window_bounds = array<i64: 1, 128>}, {pipeline_mode = #tpu.pipeline_mode<synchronous>, transform_indices = @transform_6, window_bounds = array<i64: 128, 128>}, {pipeline_mode = #tpu.pipeline_mode<synchronous>, transform_indices = @transform_7, window_bounds = array<i64: 1, 128>}, {transform_indices = @transform_8, window_bounds = array<i64: 8, 128>}, {transform_indices = @transform_9, window_bounds = array<i64: 8, 128>}]} {
    %c0 = arith.constant 0 : index
    %c0_0 = arith.constant 0 : index
    %0 = vector.load %arg1[%c0, %c0_0] : memref<64x512xbf16, #tpu.memory_space<vmem>>, vector<64x512xbf16>
    %c0_1 = arith.constant 0 : index
    %c0_2 = arith.constant 0 : index
    %1 = vector.load %arg3[%c0_1, %c0_2] : memref<512x128xbf16, #tpu.memory_space<vmem>>, vector<512x128xbf16>
    %cst = arith.constant dense<0.000000e+00> : vector<64x128xf32>
    %2 = tpu.matmul %0, %1, %cst {dimension_numbers = #tpu.dot_dimension_numbers<[1], [0], [0], [1], [0, 0, 1, 1], [], []>} : vector<64x512xbf16>, vector<512x128xbf16>, vector<64x128xf32> -> vector<64x128xf32>
    %c0_3 = arith.constant 0 : index
    %c0_4 = arith.constant 0 : index
    %3 = vector.load %arg4[%c0_3, %c0_4] : memref<1x128xf32, #tpu.memory_space<vmem>>, vector<1x128xf32>
    %4 = vector.broadcast %3 : vector<1x128xf32> to vector<64x128xf32>
    %5 = arith.addf %2, %4 : vector<64x128xf32>
    %cst_5 = arith.constant 0.000000e+00 : f32
    %6 = vector.broadcast %cst_5 : f32 to vector<64x128xf32>
    %7 = arith.maximumf %5, %6 : vector<64x128xf32>
    %c0_6 = arith.constant 0 : index
    %c0_7 = arith.constant 0 : index
    %8 = vector.load %arg2[%c0_6, %c0_7] : memref<8x64xf32, #tpu.memory_space<vmem>>, vector<8x64xf32>
    %cst_8 = arith.constant dense<0.000000e+00> : vector<8x128xf32>
    %9 = tpu.matmul %8, %7, %cst_8 {dimension_numbers = #tpu.dot_dimension_numbers<[1], [0], [0], [1], [0, 0, 1, 1], [], []>} : vector<8x64xf32>, vector<64x128xf32>, vector<8x128xf32> -> vector<8x128xf32>
    %c0_9 = arith.constant 0 : index
    %c0_10 = arith.constant 0 : index
    %10 = vector.load %arg4[%c0_9, %c0_10] : memref<1x128xf32, #tpu.memory_space<vmem>>, vector<1x128xf32>
    %cst_11 = arith.constant 0.000000e+00 : f32
    %11 = vector.broadcast %cst_11 : f32 to vector<1x128xf32>
    %12 = arith.maximumf %10, %11 : vector<1x128xf32>
    %cst_12 = arith.constant 0.973333358 : f32
    %13 = vector.broadcast %cst_12 : f32 to vector<1x128xf32>
    %14 = arith.mulf %13, %12 : vector<1x128xf32>
    %15 = vector.broadcast %14 : vector<1x128xf32> to vector<8x128xf32>
    %16 = arith.addf %9, %15 : vector<8x128xf32>
    %c0_13 = arith.constant 0 : index
    %c0_14 = arith.constant 0 : index
    %17 = vector.load %arg5[%c0_13, %c0_14] : memref<128x128xf32, #tpu.memory_space<vmem>>, vector<128x128xf32>
    %cst_15 = arith.constant dense<0.000000e+00> : vector<8x128xf32>
    %18 = tpu.matmul %16, %17, %cst_15 {dimension_numbers = #tpu.dot_dimension_numbers<[1], [0], [0], [1], [0, 0, 1, 1], [], []>} : vector<8x128xf32>, vector<128x128xf32>, vector<8x128xf32> -> vector<8x128xf32>
    %c0_16 = arith.constant 0 : index
    %c0_17 = arith.constant 0 : index
    %19 = vector.load %arg6[%c0_16, %c0_17] : memref<1x128xf32, #tpu.memory_space<vmem>>, vector<1x128xf32>
    %20 = vector.broadcast %19 : vector<1x128xf32> to vector<8x128xf32>
    %21 = arith.addf %18, %20 : vector<8x128xf32>
    %cst_18 = arith.constant 0.000000e+00 : f32
    %22 = vector.broadcast %cst_18 : f32 to vector<8x128xf32>
    %23 = arith.maximumf %21, %22 : vector<8x128xf32>
    %c0_19 = arith.constant 0 : index
    %c0_20 = arith.constant 0 : index
    %24 = vector.load %arg7[%c0_19, %c0_20] : memref<128x128xf32, #tpu.memory_space<vmem>>, vector<128x128xf32>
    %cst_21 = arith.constant dense<0.000000e+00> : vector<8x128xf32>
    %25 = tpu.matmul %23, %24, %cst_21 {dimension_numbers = #tpu.dot_dimension_numbers<[1], [0], [0], [1], [0, 0, 1, 1], [], []>} : vector<8x128xf32>, vector<128x128xf32>, vector<8x128xf32> -> vector<8x128xf32>
    %c0_22 = arith.constant 0 : index
    %c0_23 = arith.constant 0 : index
    %26 = vector.load %arg8[%c0_22, %c0_23] : memref<1x128xf32, #tpu.memory_space<vmem>>, vector<1x128xf32>
    %27 = vector.broadcast %26 : vector<1x128xf32> to vector<8x128xf32>
    %28 = arith.addf %25, %27 : vector<8x128xf32>
    %c0_24 = arith.constant 0 : index
    %c0_25 = arith.constant 0 : index
    %29 = vector.load %arg9[%c0_24, %c0_25] : memref<8x128xf32, #tpu.memory_space<vmem>>, vector<8x128xf32>
    tpu.vector_store %arg9[%c0_24, %c0_25], %23 {strides = array<i32>} : memref<8x128xf32, #tpu.memory_space<vmem>>, vector<8x128xf32>,
    %c0_26 = arith.constant 0 : index
    %c0_27 = arith.constant 0 : index
    %30 = vector.load %arg10[%c0_26, %c0_27] : memref<8x128xf32, #tpu.memory_space<vmem>>, vector<8x128xf32>
    tpu.vector_store %arg10[%c0_26, %c0_27], %28 {strides = array<i32>} : memref<8x128xf32, #tpu.memory_space<vmem>>, vector<8x128xf32>,
    return
  }
  func.func @transform_0(%arg0: i32) -> (i32, i32) {
    %c0_i32 = arith.constant 0 : i32
    %c0_i32_0 = arith.constant 0 : i32
    return %arg0, %c0_i32 : i32, i32
  }
  func.func @transform_1(%arg0: i32) -> (i32, i32) {
    %c0_i32 = arith.constant 0 : i32
    %c0_i32_0 = arith.constant 0 : i32
    %c0_i32_1 = arith.constant 0 : i32
    return %c0_i32, %c0_i32_0 : i32, i32
  }
  func.func @transform_2(%arg0: i32) -> (i32, i32) {
    %c0_i32 = arith.constant 0 : i32
    %c0_i32_0 = arith.constant 0 : i32
    %c0_i32_1 = arith.constant 0 : i32
    return %c0_i32, %c0_i32_0 : i32, i32
  }
  func.func @transform_3(%arg0: i32) -> (i32, i32) {
    %c0_i32 = arith.constant 0 : i32
    %c0_i32_0 = arith.constant 0 : i32
    %c0_i32_1 = arith.constant 0 : i32
    return %c0_i32, %c0_i32_0 : i32, i32
  }
  func.func @transform_4(%arg0: i32) -> (i32, i32) {
    %c0_i32 = arith.constant 0 : i32
    %c0_i32_0 = arith.constant 0 : i32
    %c0_i32_1 = arith.constant 0 : i32
    return %c0_i32, %c0_i32_0 : i32, i32
  }
  func.func @transform_5(%arg0: i32) -> (i32, i32) {
    %c0_i32 = arith.constant 0 : i32
    %c0_i32_0 = arith.constant 0 : i32
    %c0_i32_1 = arith.constant 0 : i32
    return %c0_i32, %c0_i32_0 : i32, i32
  }
  func.func @transform_6(%arg0: i32) -> (i32, i32) {
    %c0_i32 = arith.constant 0 : i32
    %c0_i32_0 = arith.constant 0 : i32
    %c0_i32_1 = arith.constant 0 : i32
    return %c0_i32, %c0_i32_0 : i32, i32
  }
  func.func @transform_7(%arg0: i32) -> (i32, i32) {
    %c0_i32 = arith.constant 0 : i32
    %c0_i32_0 = arith.constant 0 : i32
    %c0_i32_1 = arith.constant 0 : i32
    return %c0_i32, %c0_i32_0 : i32, i32
  }
  func.func @transform_8(%arg0: i32) -> (i32, i32) {
    %c0_i32 = arith.constant 0 : i32
    %c0_i32_0 = arith.constant 0 : i32
    return %arg0, %c0_i32 : i32, i32
  }
  func.func @transform_9(%arg0: i32) -> (i32, i32) {
    %c0_i32 = arith.constant 0 : i32
    %c0_i32_0 = arith.constant 0 : i32
    return %arg0, %c0_i32 : i32, i32
  }
}

</mosaic_0001>

<llo_original>
// kernel: net_forward.1
$region0: #{net_forward.1}
  #allocation0 [shape = 'u32[]', space=smem, size = 0x4, offset = 0x4, fixed_abs, tag = 'smem constant byte address 0x4 - core index']
  #allocation1 [shape = 'u32[144,128]{1,0:T(1,128)}', space=vmem, size = 0x12000, scoped, tag = 'internal scratch']
  %s0 = inlined_call_operand.vmem [shape: bf16[64,512], index: 0, kind: input, shape index: {}]
  %s1 = inlined_call_operand.vmem [shape: f32[8,64], index: 1, kind: input, shape index: {}]
  %s2 = inlined_call_operand.vmem [shape: bf16[512,128], index: 2, kind: input, shape index: {}]
  %s3 = inlined_call_operand.vmem [shape: f32[1,128], index: 3, kind: input, shape index: {}]
  %s4 = inlined_call_operand.hbm [shape: f32[128,128], index: 4, kind: input, shape index: {}]
  %s5 = inlined_call_operand.vmem [shape: f32[1,128], index: 5, kind: input, shape index: {}]
  %s6 = inlined_call_operand.hbm [shape: f32[128,128], index: 6, kind: input, shape index: {}]
  %s7 = inlined_call_operand.vmem [shape: f32[1,128], index: 7, kind: input, shape index: {}]
  %s8 = inlined_call_operand.hbm [shape: f32[8,128], index: 8, kind: output, shape index: {0}]
  %s9 = inlined_call_operand.vmem [shape: f32[8,128], index: 9, kind: output, shape index: {1}]
  %10 = xla_tuple %s8, %s9
  %s11 = sld [smem:[#allocation0]]
  $region58: #{net_forward.1} parent=0
    _
  %s13 = ssub.s32 1, %s11
  %s14 = scalar_select 0, %s13, %s11
  $region1: #{net_forward.1} parent=0
    #allocation2 [shape = 'u8[65536]{0}', space=vmem, size = 0x10000, scoped, tag = 'input window, operand 4, single buffered']
    #allocation3 [shape = 's32[1]{0}', space=sflag, size = 0x4, scoped, tag = 'scoped memory for net_forward.1']
    #allocation4 [shape = 's32[1]{0}', space=sflag, size = 0x4, scoped, tag = 'scoped memory for net_forward.1']
    #allocation5 [shape = 'u8[65536]{0}', space=vmem, size = 0x10000, scoped, tag = 'input window, operand 6, single buffered']
    #allocation6 [shape = 's32[1]{0}', space=sflag, size = 0x4, scoped, tag = 'scoped memory for net_forward.1']
    #allocation7 [shape = 'u8[4096]{0}', space=vmem, size = 0x1000, scoped, tag = 'output window, operand 0, single buffered']
    %15 = vsyncpa [#allocation3], 0
    %16 = vsyncpa [#allocation6], 0
    %17 = vsyncpa [#allocation4], 0
    // Predicated region
    $region2: #{net_forward.1} parent=1 // pred_check
      _
    $region3: #{net_forward.1} parent=1 // pred_check_branch
      %19 = sbr.rel (0) target = $region5
    $region4: #{net_forward.1} parent=1 // pred_region
      _
    $region5: #{net_forward.1} parent=1 // pred_fallthru
      _
    // Predicated region
    $region6: #{net_forward.1} parent=1 // pred_check
      _
    $region7: #{net_forward.1} parent=1 // pred_check_branch
      %21 = sbr.rel (0) target = $region9
    $region8: #{net_forward.1} parent=1 // pred_region
      _
    $region9: #{net_forward.1} parent=1 // pred_fallthru
      _
    // Predicated region
    $region10: #{net_forward.1} parent=1 // pred_check
      _
    $region11: #{net_forward.1} parent=1 // pred_check_branch
      %23 = sbr.rel (0) target = $region13
    $region12: #{net_forward.1} parent=1 // pred_region
      _
    $region13: #{net_forward.1} parent=1 // pred_fallthru
      _
    // Predicated region
    $region14: #{net_forward.1} parent=1 // pred_check
      _
    $region15: #{net_forward.1} parent=1 // pred_check_branch
      %25 = sbr.rel (0) target = $region17
    $region16: #{net_forward.1} parent=1 // pred_region
      _
    $region17: #{net_forward.1} parent=1 // pred_fallthru
      _
    // Predicated region
    $region18: #{net_forward.1} parent=1 // pred_check
      _
    $region19: #{net_forward.1} parent=1 // pred_check_branch
      %27 = sbr.rel (0) target = $region21
    $region20: #{net_forward.1} parent=1 // pred_region
      %s29 = ssub.s32 2048, 2048
      %30 = vsyncadd [#allocation3], %s29
      %s31 = sshll.u32 [#allocation2], 4
      %s32 = int_to_ptr.vmem [resolvable:$true] %s31
      %37 = dma.hbm_to_vmem [thread:$0]  %s4, 2048, %s32, [#allocation3], 128, 128, 8
    $region21: #{net_forward.1} parent=1 // pred_fallthru
      _
    // Predicated region
    $region22: #{net_forward.1} parent=1 // pred_check
      _
    $region23: #{net_forward.1} parent=1 // pred_check_branch
      %39 = sbr.rel (0) target = $region25
    $region24: #{net_forward.1} parent=1 // pred_region
      _
    $region25: #{net_forward.1} parent=1 // pred_fallthru
      _
    // Predicated region
    $region26: #{net_forward.1} parent=1 // pred_check
      _
    $region27: #{net_forward.1} parent=1 // pred_check_branch
      %41 = sbr.rel (0) target = $region29
    $region28: #{net_forward.1} parent=1 // pred_region
      %s43 = ssub.s32 2048, 2048
      %44 = vsyncadd [#allocation6], %s43
      %s45 = sshll.u32 [#allocation5], 4
      %s46 = int_to_ptr.vmem [resolvable:$true] %s45
      %51 = dma.hbm_to_vmem [thread:$0]  %s6, 2048, %s46, [#allocation6], 128, 128, 8
    $region29: #{net_forward.1} parent=1 // pred_fallthru
      _
    // Predicated region
    $region30: #{net_forward.1} parent=1 // pred_check
      _
    $region31: #{net_forward.1} parent=1 // pred_check_branch
      %53 = sbr.rel (0) target = $region33
    $region32: #{net_forward.1} parent=1 // pred_region
      _
    $region33: #{net_forward.1} parent=1 // pred_fallthru
      _
    // Predicated region
    $region34: #{net_forward.1} parent=1 // pred_check
      _
    $region35: #{net_forward.1} parent=1 // pred_check_branch
      %55 = sbr.rel (0) target = $region37
    $region36: #{net_forward.1} parent=1 // pred_region
      %56 = dma.done [#allocation3], 2048
    $region37: #{net_forward.1} parent=1 // pred_fallthru
      _
    // Predicated region
    $region38: #{net_forward.1} parent=1 // pred_check
      _
    $region39: #{net_forward.1} parent=1 // pred_check_branch
      %58 = sbr.rel (0) target = $region41
    $region40: #{net_forward.1} parent=1 // pred_region
      %59 = dma.done [#allocation6], 2048
    $region41: #{net_forward.1} parent=1 // pred_fallthru
      _
    %v61 = vld [vmem:[%s0] sm:$0xff]
    %v62 = vld [vmem:[%s0 + $0x8] sm:$0xff]
    %v63 = vld [vmem:[%s0 + $0x10] sm:$0xff]
    %v64 = vld [vmem:[%s0 + $0x18] sm:$0xff]
    %v65 = vld [vmem:[%s0 + $0x20] sm:$0xff]
    %v66 = vld [vmem:[%s0 + $0x28] sm:$0xff]
    %v67 = vld [vmem:[%s0 + $0x30] sm:$0xff]
    %v68 = vld [vmem:[%s0 + $0x38] sm:$0xff]
    %v69 = vld [vmem:[%s0 + $0x40] sm:$0xff]
    %v70 = vld [vmem:[%s0 + $0x48] sm:$0xff]
    %v71 = vld [vmem:[%s0 + $0x50] sm:$0xff]
    %v72 = vld [vmem:[%s0 + $0x58] sm:$0xff]
    %v73 = vld [vmem:[%s0 + $0x60] sm:$0xff]
    %v74 = vld [vmem:[%s0 + $0x68] sm:$0xff]
    %v75 = vld [vmem:[%s0 + $0x70] sm:$0xff]
    %v76 = vld [vmem:[%s0 + $0x78] sm:$0xff]
    %v77 = vld [vmem:[%s2] sm:$0xf]
    %v78 = vld [vmem:[%s2 + $0x4] sm:$0xf]
    %v79 = vld [vmem:[%s2 + $0x8] sm:$0xf]
    %v80 = vld [vmem:[%s2 + $0xc] sm:$0xf]
    %v81 = vld [vmem:[%s2 + $0x10] sm:$0xf]
    %v82 = vld [vmem:[%s2 + $0x14] sm:$0xf]
    %v83 = vld [vmem:[%s2 + $0x18] sm:$0xf]
    %v84 = vld [vmem:[%s2 + $0x1c] sm:$0xf]
    %v85 = vld [vmem:[%s2 + $0x20] sm:$0xf]
    %v86 = vld [vmem:[%s2 + $0x24] sm:$0xf]
    %v87 = vld [vmem:[%s2 + $0x28] sm:$0xf]
    %v88 = vld [vmem:[%s2 + $0x2c] sm:$0xf]
    %v89 = vld [vmem:[%s2 + $0x30] sm:$0xf]
    %v90 = vld [vmem:[%s2 + $0x34] sm:$0xf]
    %v91 = vld [vmem:[%s2 + $0x38] sm:$0xf]
    %v92 = vld [vmem:[%s2 + $0x3c] sm:$0xf]
    %v93 = vld [vmem:[%s2 + $0x40] sm:$0xf]
    %v94 = vld [vmem:[%s2 + $0x44] sm:$0xf]
    %v95 = vld [vmem:[%s2 + $0x48] sm:$0xf]
    %v96 = vld [vmem:[%s2 + $0x4c] sm:$0xf]
    %v97 = vld [vmem:[%s2 + $0x50] sm:$0xf]
    %v98 = vld [vmem:[%s2 + $0x54] sm:$0xf]
    %v99 = vld [vmem:[%s2 + $0x58] sm:$0xf]
    %v100 = vld [vmem:[%s2 + $0x5c] sm:$0xf]
    %v101 = vld [vmem:[%s2 + $0x60] sm:$0xf]
    %v102 = vld [vmem:[%s2 + $0x64] sm:$0xf]
    %v103 = vld [vmem:[%s2 + $0x68] sm:$0xf]
    %v104 = vld [vmem:[%s2 + $0x6c] sm:$0xf]
    %v105 = vld [vmem:[%s2 + $0x70] sm:$0xf]
    %v106 = vld [vmem:[%s2 + $0x74] sm:$0xf]
    %v107 = vld [vmem:[%s2 + $0x78] sm:$0xf]
    %v108 = vld [vmem:[%s2 + $0x7c] sm:$0xf]
    %v109 = vld [vmem:[%s2 + $0x80] sm:$0xf]
    %v110 = vld [vmem:[%s2 + $0x84] sm:$0xf]
    %v111 = vld [vmem:[%s2 + $0x88] sm:$0xf]
    %v112 = vld [vmem:[%s2 + $0x8c] sm:$0xf]
    %v113 = vld [vmem:[%s2 + $0x90] sm:$0xf]
    %v114 = vld [vmem:[%s2 + $0x94] sm:$0xf]
    %v115 = vld [vmem:[%s2 + $0x98] sm:$0xf]
    %v116 = vld [vmem:[%s2 + $0x9c] sm:$0xf]
    %v117 = vld [vmem:[%s2 + $0xa0] sm:$0xf]
    %v118 = vld [vmem:[%s2 + $0xa4] sm:$0xf]
    %v119 = vld [vmem:[%s2 + $0xa8] sm:$0xf]
    %v120 = vld [vmem:[%s2 + $0xac] sm:$0xf]
    %v121 = vld [vmem:[%s2 + $0xb0] sm:$0xf]
    %v122 = vld [vmem:[%s2 + $0xb4] sm:$0xf]
    %v123 = vld [vmem:[%s2 + $0xb8] sm:$0xf]
    %v124 = vld [vmem:[%s2 + $0xbc] sm:$0xf]
    %v125 = vld [vmem:[%s2 + $0xc0] sm:$0xf]
    %v126 = vld [vmem:[%s2 + $0xc4] sm:$0xf]
    %v127 = vld [vmem:[%s2 + $0xc8] sm:$0xf]
    %v128 = vld [vmem:[%s2 + $0xcc] sm:$0xf]
    %v129 = vld [vmem:[%s2 + $0xd0] sm:$0xf]
    %v130 = vld [vmem:[%s2 + $0xd4] sm:$0xf]
    %v131 = vld [vmem:[%s2 + $0xd8] sm:$0xf]
    %v132 = vld [vmem:[%s2 + $0xdc] sm:$0xf]
    %v133 = vld [vmem:[%s2 + $0xe0] sm:$0xf]
    %v134 = vld [vmem:[%s2 + $0xe4] sm:$0xf]
    %v135 = vld [vmem:[%s2 + $0xe8] sm:$0xf]
    %v136 = vld [vmem:[%s2 + $0xec] sm:$0xf]
    %v137 = vld [vmem:[%s2 + $0xf0] sm:$0xf]
    %v138 = vld [vmem:[%s2 + $0xf4] sm:$0xf]
    %v139 = vld [vmem:[%s2 + $0xf8] sm:$0xf]
    %v140 = vld [vmem:[%s2 + $0xfc] sm:$0xf]
    %v141 = vld [vmem:[%s3] sm:$0x1]
    %v143 = vlaneseq
    %v144 = vshrl.u32 %v143, 7
    %v145 = vsub.s32 0, %v144
    %v146 = vrot.slane %v141, %v145
    %v164 = vunpack.c.l.b16 %v61
    %v165 = vunpack.c.h.b16 %v61
    %v166 = vunpack.c.l.b16 %v62
    %v167 = vunpack.c.h.b16 %v62
    %v168 = vunpack.c.l.b16 %v63
    %v169 = vunpack.c.h.b16 %v63
    %v170 = vunpack.c.l.b16 %v64
    %v171 = vunpack.c.h.b16 %v64
    %v172 = vunpack.c.l.b16 %v65
    %v173 = vunpack.c.h.b16 %v65
    %v174 = vunpack.c.l.b16 %v66
    %v175 = vunpack.c.h.b16 %v66
    %v176 = vunpack.c.l.b16 %v67
    %v177 = vunpack.c.h.b16 %v67
    %v178 = vunpack.c.l.b16 %v68
    %v179 = vunpack.c.h.b16 %v68
    %v180 = vunpack.c.l.b16 %v69
    %v181 = vunpack.c.h.b16 %v69
    %v182 = vunpack.c.l.b16 %v70
    %v183 = vunpack.c.h.b16 %v70
    %v184 = vunpack.c.l.b16 %v71
    %v185 = vunpack.c.h.b16 %v71
    %v186 = vunpack.c.l.b16 %v72
    %v187 = vunpack.c.h.b16 %v72
    %v188 = vunpack.c.l.b16 %v73
    %v189 = vunpack.c.h.b16 %v73
    %v190 = vunpack.c.l.b16 %v74
    %v191 = vunpack.c.h.b16 %v74
    %v192 = vunpack.c.l.b16 %v75
    %v193 = vunpack.c.h.b16 %v75
    %v194 = vunpack.c.l.b16 %v76
    %v195 = vunpack.c.h.b16 %v76
    %v196 = vpack.c.b16 %v168, %v164
    %v197 = vpack.c.b16 %v169, %v165
    %v198 = vpack.c.b16 %v170, %v166
    %v199 = vpack.c.b16 %v171, %v167
    %v200 = vpack.c.b16 %v176, %v172
    %v201 = vpack.c.b16 %v177, %v173
    %v202 = vpack.c.b16 %v178, %v174
    %v203 = vpack.c.b16 %v179, %v175
    %v204 = vpack.c.b16 %v184, %v180
    %v205 = vpack.c.b16 %v185, %v181
    %v206 = vpack.c.b16 %v186, %v182
    %v207 = vpack.c.b16 %v187, %v183
    %v208 = vpack.c.b16 %v192, %v188
    %v209 = vpack.c.b16 %v193, %v189
    %v210 = vpack.c.b16 %v194, %v190
    %v211 = vpack.c.b16 %v195, %v191
    %v292 = vunpack.c.l.b16 %v77
    %v293 = vunpack.c.l.b16 %v78
    %v294 = vunpack.c.l.b16 %v79
    %v295 = vunpack.c.l.b16 %v80
    %v296 = vunpack.c.l.b16 %v81
    %v297 = vunpack.c.l.b16 %v82
    %v298 = vunpack.c.l.b16 %v83
    %v299 = vunpack.c.l.b16 %v84
    %v300 = vunpack.c.l.b16 %v85
    %v301 = vunpack.c.l.b16 %v86
    %v302 = vunpack.c.l.b16 %v87
    %v303 = vunpack.c.l.b16 %v88
    %v304 = vunpack.c.l.b16 %v89
    %v305 = vunpack.c.l.b16 %v90
    %v306 = vunpack.c.l.b16 %v91
    %v307 = vunpack.c.l.b16 %v92
    %v308 = vunpack.c.l.b16 %v93
    %v309 = vunpack.c.l.b16 %v94
    %v310 = vunpack.c.l.b16 %v95
    %v311 = vunpack.c.l.b16 %v96
    %v312 = vunpack.c.l.b16 %v97
    %v313 = vunpack.c.l.b16 %v98
    %v314 = vunpack.c.l.b16 %v99
    %v315 = vunpack.c.l.b16 %v100
    %v316 = vunpack.c.l.b16 %v101
    %v317 = vunpack.c.l.b16 %v102
    %v318 = vunpack.c.l.b16 %v103
    %v319 = vunpack.c.l.b16 %v104
    %v320 = vunpack.c.l.b16 %v105
    %v321 = vunpack.c.l.b16 %v106
    %v322 = vunpack.c.l.b16 %v107
    %v323 = vunpack.c.l.b16 %v108
    %v324 = vunpack.c.l.b16 %v109
    %v325 = vunpack.c.l.b16 %v110
    %v326 = vunpack.c.l.b16 %v111
    %v327 = vunpack.c.l.b16 %v112
    %v328 = vunpack.c.l.b16 %v113
    %v329 = vunpack.c.l.b16 %v114
    %v330 = vunpack.c.l.b16 %v115
    %v331 = vunpack.c.l.b16 %v116
    %v332 = vunpack.c.l.b16 %v117
    %v333 = vunpack.c.l.b16 %v118
    %v334 = vunpack.c.l.b16 %v119
    %v335 = vunpack.c.l.b16 %v120
    %v336 = vunpack.c.l.b16 %v121
    %v337 = vunpack.c.l.b16 %v122
    %v338 = vunpack.c.l.b16 %v123
    %v339 = vunpack.c.l.b16 %v124
    %v340 = vunpack.c.l.b16 %v125
    %v341 = vunpack.c.l.b16 %v126
    %v342 = vunpack.c.l.b16 %v127
    %v343 = vunpack.c.l.b16 %v128
    %v344 = vunpack.c.l.b16 %v129
    %v345 = vunpack.c.l.b16 %v130
    %v346 = vunpack.c.l.b16 %v131
    %v347 = vunpack.c.l.b16 %v132
    %v348 = vunpack.c.l.b16 %v133
    %v349 = vunpack.c.l.b16 %v134
    %v350 = vunpack.c.l.b16 %v135
    %v351 = vunpack.c.l.b16 %v136
    %v352 = vunpack.c.l.b16 %v137
    %v353 = vunpack.c.l.b16 %v138
    %v354 = vunpack.c.l.b16 %v139
    %v355 = vunpack.c.l.b16 %v140
    %v356 = vpack.c.b16 %v293, %v292
    %v357 = vpack.c.b16 %v295, %v294
    %v358 = vpack.c.b16 %v297, %v296
    %v359 = vpack.c.b16 %v299, %v298
    %v360 = vpack.c.b16 %v301, %v300
    %v361 = vpack.c.b16 %v303, %v302
    %v362 = vpack.c.b16 %v305, %v304
    %v363 = vpack.c.b16 %v307, %v306
    %v364 = vpack.c.b16 %v309, %v308
    %v365 = vpack.c.b16 %v311, %v310
    %v366 = vpack.c.b16 %v313, %v312
    %v367 = vpack.c.b16 %v315, %v314
    %v368 = vpack.c.b16 %v317, %v316
    %v369 = vpack.c.b16 %v319, %v318
    %v370 = vpack.c.b16 %v321, %v320
    %v371 = vpack.c.b16 %v323, %v322
    %v372 = vpack.c.b16 %v325, %v324
    %v373 = vpack.c.b16 %v327, %v326
    %v374 = vpack.c.b16 %v329, %v328
    %v375 = vpack.c.b16 %v331, %v330
    %v376 = vpack.c.b16 %v333, %v332
    %v377 = vpack.c.b16 %v335, %v334
    %v378 = vpack.c.b16 %v337, %v336
    %v379 = vpack.c.b16 %v339, %v338
    %v380 = vpack.c.b16 %v341, %v340
    %v381 = vpack.c.b16 %v343, %v342
    %v382 = vpack.c.b16 %v345, %v344
    %v383 = vpack.c.b16 %v347, %v346
    %v384 = vpack.c.b16 %v349, %v348
    %v385 = vpack.c.b16 %v351, %v350
    %v386 = vpack.c.b16 %v353, %v352
    %v387 = vpack.c.b16 %v355, %v354
    %420 = vmatprep.subr.bf16.mxu0 0
    %421 = vmatpush1.bf16.msra.mxu0 %v356
    %422 = vmatprep.subr.bf16.mxu0 0
    %423 = vmatpush1.bf16.msra.mxu0 %v357
    %424 = vmatprep.subr.bf16.mxu0 0
    %425 = vmatpush1.bf16.msra.mxu0 %v358
    %426 = vmatprep.subr.bf16.mxu0 0
    %427 = vmatpush1.bf16.msra.mxu0 %v359
    %428 = vmatprep.subr.bf16.mxu0 0
    %429 = vmatpush1.bf16.msra.mxu0 %v360
    %430 = vmatprep.subr.bf16.mxu0 0
    %431 = vmatpush1.bf16.msra.mxu0 %v361
    %432 = vmatprep.subr.bf16.mxu0 0
    %433 = vmatpush1.bf16.msra.mxu0 %v362
    %434 = vmatprep.subr.bf16.mxu0 0
    %435 = vmatpush1.bf16.msra.mxu0 %v363
    %436 = vmatprep.subr.bf16.mxu0 0
    %437 = vmatpush1.bf16.msra.mxu0 %v364
    %438 = vmatprep.subr.bf16.mxu0 0
    %439 = vmatpush1.bf16.msra.mxu0 %v365
    %440 = vmatprep.subr.bf16.mxu0 0
    %441 = vmatpush1.bf16.msra.mxu0 %v366
    %442 = vmatprep.subr.bf16.mxu0 0
    %443 = vmatpush1.bf16.msra.mxu0 %v367
    %444 = vmatprep.subr.bf16.mxu0 0
    %445 = vmatpush1.bf16.msra.mxu0 %v368
    %446 = vmatprep.subr.bf16.mxu0 0
    %447 = vmatpush1.bf16.msra.mxu0 %v369
    %448 = vmatprep.subr.bf16.mxu0 0
    %449 = vmatpush1.bf16.msra.mxu0 %v370
    %450 = vmatprep.subr.bf16.mxu0 0
    %451 = vmatpush1.bf16.msra.mxu0 %v371
    %452 = vmatprep.mubr.bf16.mxu0 %v197
    %453 = vmatmul.mubr.bf16.gmra.mrb[0].mxu0 %v196
    %v454 = vpop.f32.mrb[0].mxu0
    %v455 = vadd.f32 %v146, %v454
    %v456 = vpop.f32.mrb[0].mxu0
    %v457 = vpop.f32.mrb[0].mxu0
    %v458 = vadd.f32 %v146, %v457
    %v459 = vpop.f32.mrb[0].mxu0
    %460 = vmatprep.mubr.bf16.mxu0 %v201
    %461 = vmatmul.mubr.bf16.gmra.mrb[0].mxu0 %v200
    %v462 = vpop.f32.mrb[0].mxu0
    %v463 = vadd.f32 %v146, %v462
    %v464 = vpop.f32.mrb[0].mxu0
    %v465 = vpop.f32.mrb[0].mxu0
    %v466 = vadd.f32 %v146, %v465
    %v467 = vpop.f32.mrb[0].mxu0
    %468 = vmatprep.mubr.bf16.mxu0 %v205
    %469 = vmatmul.mubr.bf16.gmra.mrb[0].mxu0 %v204
    %v470 = vpop.f32.mrb[0].mxu0
    %v471 = vadd.f32 %v146, %v470
    %v472 = vpop.f32.mrb[0].mxu0
    %v473 = vpop.f32.mrb[0].mxu0
    %v474 = vadd.f32 %v146, %v473
    %v475 = vpop.f32.mrb[0].mxu0
    %476 = vmatprep.mubr.bf16.mxu0 %v209
    %477 = vmatmul.mubr.bf16.gmra.mrb[0].mxu0 %v208
    %v478 = vpop.f32.mrb[0].mxu0
    %v479 = vadd.f32 %v146, %v478
    %v480 = vpop.f32.mrb[0].mxu0
    %v481 = vpop.f32.mrb[0].mxu0
    %v482 = vadd.f32 %v146, %v481
    %v483 = vpop.f32.mrb[0].mxu0
    %484 = vdwg.mxu0
    %485 = vmatprep.subr.bf16.mxu0 0
    %486 = vmatpush1.bf16.msra.mxu0 %v372
    %487 = vmatprep.subr.bf16.mxu0 0
    %488 = vmatpush1.bf16.msra.mxu0 %v373
    %489 = vmatprep.subr.bf16.mxu0 0
    %490 = vmatpush1.bf16.msra.mxu0 %v374
    %491 = vmatprep.subr.bf16.mxu0 0
    %492 = vmatpush1.bf16.msra.mxu0 %v375
    %493 = vmatprep.subr.bf16.mxu0 0
    %494 = vmatpush1.bf16.msra.mxu0 %v376
    %495 = vmatprep.subr.bf16.mxu0 0
    %496 = vmatpush1.bf16.msra.mxu0 %v377
    %497 = vmatprep.subr.bf16.mxu0 0
    %498 = vmatpush1.bf16.msra.mxu0 %v378
    %499 = vmatprep.subr.bf16.mxu0 0
    %500 = vmatpush1.bf16.msra.mxu0 %v379
    %501 = vmatprep.subr.bf16.mxu0 0
    %502 = vmatpush1.bf16.msra.mxu0 %v380
    %503 = vmatprep.subr.bf16.mxu0 0
    %504 = vmatpush1.bf16.msra.mxu0 %v381
    %505 = vmatprep.subr.bf16.mxu0 0
    %506 = vmatpush1.bf16.msra.mxu0 %v382
    %507 = vmatprep.subr.bf16.mxu0 0
    %508 = vmatpush1.bf16.msra.mxu0 %v383
    %509 = vmatprep.subr.bf16.mxu0 0
    %510 = vmatpush1.bf16.msra.mxu0 %v384
    %511 = vmatprep.subr.bf16.mxu0 0
    %512 = vmatpush1.bf16.msra.mxu0 %v385
    %513 = vmatprep.subr.bf16.mxu0 0
    %514 = vmatpush1.bf16.msra.mxu0 %v386
    %515 = vmatprep.subr.bf16.mxu0 0
    %516 = vmatpush1.bf16.msra.mxu0 %v387
    %517 = vmatprep.mubr.bf16.mxu0 %v199
    %518 = vmatmul.mubr.bf16.gmra.mrb[0].mxu0 %v198
    %v519 = vpop.f32.mrb[0].mxu0
    %v520 = vadd.f32 %v455, %v519
    %v521 = vpop.f32.mrb[0].mxu0
    %v522 = vpop.f32.mrb[0].mxu0
    %v523 = vadd.f32 %v458, %v522
    %v524 = vpop.f32.mrb[0].mxu0
    %525 = vmatprep.mubr.bf16.mxu0 %v203
    %526 = vmatmul.mubr.bf16.gmra.mrb[0].mxu0 %v202
    %v527 = vpop.f32.mrb[0].mxu0
    %v528 = vadd.f32 %v463, %v527
    %v529 = vpop.f32.mrb[0].mxu0
    %v530 = vpop.f32.mrb[0].mxu0
    %v531 = vadd.f32 %v466, %v530
    %v532 = vpop.f32.mrb[0].mxu0
    %533 = vmatprep.mubr.bf16.mxu0 %v207
    %534 = vmatmul.mubr.bf16.gmra.mrb[0].mxu0 %v206
    %v535 = vpop.f32.mrb[0].mxu0
    %v536 = vadd.f32 %v471, %v535
    %v537 = vpop.f32.mrb[0].mxu0
    %v538 = vpop.f32.mrb[0].mxu0
    %v539 = vadd.f32 %v474, %v538
    %v540 = vpop.f32.mrb[0].mxu0
    %541 = vmatprep.mubr.bf16.mxu0 %v211
    %542 = vmatmul.mubr.bf16.gmra.mrb[0].mxu0 %v210
    %v543 = vpop.f32.mrb[0].mxu0
    %v544 = vadd.f32 %v479, %v543
    %v545 = vpop.f32.mrb[0].mxu0
    %v546 = vpop.f32.mrb[0].mxu0
    %v547 = vadd.f32 %v482, %v546
    %v548 = vpop.f32.mrb[0].mxu0
    %549 = vdwg.mxu0
    %v550 = vmax.f32 %v520, 0.0
    %v551 = vmax.f32 %v523, 0.0
    %v552 = vmax.f32 %v528, 0.0
    %v553 = vmax.f32 %v531, 0.0
    %v554 = vmax.f32 %v536, 0.0
    %v555 = vmax.f32 %v539, 0.0
    %v556 = vmax.f32 %v544, 0.0
    %v557 = vmax.f32 %v547, 0.0
    %v558 = vld [vmem:[%s1] sm:$0xff]
    %v559 = vmax.f32 %v141, 0.0
    %v560 = vmul.f32 %v559, 0.97333336
    %v562 = vlaneseq
    %v563 = vshrl.u32 %v562, 7
    %v564 = vsub.s32 0, %v563
    %v565 = vrot.slane %v560, %v564
    %vm567 = vcmask 523264
    %v569 = vsel %vm567, %v558, 0
    %571 = vmatprep.subr.mxu0 0.0
    %572 = vmatpush1.msra.mxu0 %v550
    %573 = vmatprep.subr.mxu0 0.0
    %574 = vmatpush1.msra.mxu0 %v551
    %575 = vmatprep.subr.mxu0 0.0
    %576 = vmatpush1.msra.mxu0 %v552
    %577 = vmatprep.subr.mxu0 0.0
    %578 = vmatpush1.msra.mxu0 %v553
    %579 = vmatprep.subr.mxu0 0.0
    %580 = vmatpush1.msra.mxu0 %v554
    %581 = vmatprep.subr.mxu0 0.0
    %582 = vmatpush1.msra.mxu0 %v555
    %583 = vmatprep.subr.mxu0 0.0
    %584 = vmatpush1.msra.mxu0 %v556
    %585 = vmatprep.subr.mxu0 0.0
    %586 = vmatpush1.msra.mxu0 %v557
    %587 = vmatprep.subr.mxu0 0.0
    %588 = vmatpush1.msra.mxu0 0.0
    %589 = vmatprep.subr.mxu0 0.0
    %590 = vmatpush1.msra.mxu0 0.0
    %591 = vmatprep.subr.mxu0 0.0
    %592 = vmatpush1.msra.mxu0 0.0
    %593 = vmatprep.subr.mxu0 0.0
    %594 = vmatpush1.msra.mxu0 0.0
    %595 = vmatprep.subr.mxu0 0.0
    %596 = vmatpush1.msra.mxu0 0.0
    %597 = vmatprep.subr.mxu0 0.0
    %598 = vmatpush1.msra.mxu0 0.0
    %599 = vmatprep.subr.mxu0 0.0
    %600 = vmatpush1.msra.mxu0 0.0
    %601 = vmatprep.subr.mxu0 0.0
    %602 = vmatpush1.msra.mxu0 0.0
    %603 = vmatprep.subr.mxu0 0.0
    %604 = vmatpush1.msra.mxu0 0.0
    %605 = vmatprep.subr.mxu0 0.0
    %606 = vmatpush1.msra.mxu0 0.0
    %607 = vmatprep.subr.mxu0 0.0
    %608 = vmatpush1.msra.mxu0 0.0
    %609 = vmatprep.subr.mxu0 0.0
    %610 = vmatpush1.msra.mxu0 0.0
    %611 = vmatprep.subr.mxu0 0.0
    %612 = vmatpush1.msra.mxu0 0.0
    %613 = vmatprep.subr.mxu0 0.0
    %614 = vmatpush1.msra.mxu0 0.0
    %615 = vmatprep.subr.mxu0 0.0
    %616 = vmatpush1.msra.mxu0 0.0
    %617 = vmatprep.subr.mxu0 0.0
    %618 = vmatpush1.msra.mxu0 0.0
    %619 = vmatprep.subr.mxu0 0.0
    %620 = vmatpush1.msra.mxu0 0.0
    %621 = vmatprep.subr.mxu0 0.0
    %622 = vmatpush1.msra.mxu0 0.0
    %623 = vmatprep.subr.mxu0 0.0
    %624 = vmatpush1.msra.mxu0 0.0
    %625 = vmatprep.subr.mxu0 0.0
    %626 = vmatpush1.msra.mxu0 0.0
    %627 = vmatprep.subr.mxu0 0.0
    %628 = vmatpush1.msra.mxu0 0.0
    %629 = vmatprep.subr.mxu0 0.0
    %630 = vmatpush1.msra.mxu0 0.0
    %631 = vmatprep.subr.mxu0 0.0
    %632 = vmatpush1.msra.mxu0 0.0
    %633 = vmatprep.subr.mxu0 0.0
    %634 = vmatpush1.msra.mxu0 0.0
    %635 = vmatprep.mubr.f32.mxu0 0.0
    %636 = vmatmul.mubr.f32.gmra.mrb[0].mxu0 %v569
    %v637 = vpop.f32.mrb[0].mxu0
    %v638 = vadd.f32 %v565, %v637
    %v639 = vpop.f32.mrb[0].mxu0
    %640 = vdwg.mxu0
    %v641 = vld [vmem:[#allocation2] sm:$0xff]
    %v642 = vld [vmem:[#allocation2 + $0x8] sm:$0xff]
    %v643 = vld [vmem:[#allocation2 + $0x10] sm:$0xff]
    %v644 = vld [vmem:[#allocation2 + $0x18] sm:$0xff]
    %v645 = vld [vmem:[#allocation2 + $0x20] sm:$0xff]
    %v646 = vld [vmem:[#allocation2 + $0x28] sm:$0xff]
    %v647 = vld [vmem:[#allocation2 + $0x30] sm:$0xff]
    %v648 = vld [vmem:[#allocation2 + $0x38] sm:$0xff]
    %v649 = vld [vmem:[#allocation2 + $0x40] sm:$0xff]
    %v650 = vld [vmem:[#allocation2 + $0x48] sm:$0xff]
    %v651 = vld [vmem:[#allocation2 + $0x50] sm:$0xff]
    %v652 = vld [vmem:[#allocation2 + $0x58] sm:$0xff]
    %v653 = vld [vmem:[#allocation2 + $0x60] sm:$0xff]
    %v654 = vld [vmem:[#allocation2 + $0x68] sm:$0xff]
    %v655 = vld [vmem:[#allocation2 + $0x70] sm:$0xff]
    %v656 = vld [vmem:[#allocation2 + $0x78] sm:$0xff]
    %v657 = vld [vmem:[%s5] sm:$0x1]
    %v659 = vlaneseq
    %v660 = vshrl.u32 %v659, 7
    %v661 = vsub.s32 0, %v660
    %v662 = vrot.slane %v657, %v661
    %664 = vmatprep.subr.mxu0 0.0
    %665 = vmatpush1.msra.mxu0 %v641
    %666 = vmatprep.subr.mxu0 0.0
    %667 = vmatpush1.msra.mxu0 %v642
    %668 = vmatprep.subr.mxu0 0.0
    %669 = vmatpush1.msra.mxu0 %v643
    %670 = vmatprep.subr.mxu0 0.0
    %671 = vmatpush1.msra.mxu0 %v644
    %672 = vmatprep.subr.mxu0 0.0
    %673 = vmatpush1.msra.mxu0 %v645
    %674 = vmatprep.subr.mxu0 0.0
    %675 = vmatpush1.msra.mxu0 %v646
    %676 = vmatprep.subr.mxu0 0.0
    %677 = vmatpush1.msra.mxu0 %v647
    %678 = vmatprep.subr.mxu0 0.0
    %679 = vmatpush1.msra.mxu0 %v648
    %680 = vmatprep.subr.mxu0 0.0
    %681 = vmatpush1.msra.mxu0 %v649
    %682 = vmatprep.subr.mxu0 0.0
    %683 = vmatpush1.msra.mxu0 %v650
    %684 = vmatprep.subr.mxu0 0.0
    %685 = vmatpush1.msra.mxu0 %v651
    %686 = vmatprep.subr.mxu0 0.0
    %687 = vmatpush1.msra.mxu0 %v652
    %688 = vmatprep.subr.mxu0 0.0
    %689 = vmatpush1.msra.mxu0 %v653
    %690 = vmatprep.subr.mxu0 0.0
    %691 = vmatpush1.msra.mxu0 %v654
    %692 = vmatprep.subr.mxu0 0.0
    %693 = vmatpush1.msra.mxu0 %v655
    %694 = vmatprep.subr.mxu0 0.0
    %695 = vmatpush1.msra.mxu0 %v656
    %696 = vmatprep.subr.mxu0 0.0
    %697 = vmatpush1.msra.mxu0 0.0
    %698 = vmatprep.subr.mxu0 0.0
    %699 = vmatpush1.msra.mxu0 0.0
    %700 = vmatprep.subr.mxu0 0.0
    %701 = vmatpush1.msra.mxu0 0.0
    %702 = vmatprep.subr.mxu0 0.0
    %703 = vmatpush1.msra.mxu0 0.0
    %704 = vmatprep.subr.mxu0 0.0
    %705 = vmatpush1.msra.mxu0 0.0
    %706 = vmatprep.subr.mxu0 0.0
    %707 = vmatpush1.msra.mxu0 0.0
    %708 = vmatprep.subr.mxu0 0.0
    %709 = vmatpush1.msra.mxu0 0.0
    %710 = vmatprep.subr.mxu0 0.0
    %711 = vmatpush1.msra.mxu0 0.0
    %712 = vmatprep.subr.mxu0 0.0
    %713 = vmatpush1.msra.mxu0 0.0
    %714 = vmatprep.subr.mxu0 0.0
    %715 = vmatpush1.msra.mxu0 0.0
    %716 = vmatprep.subr.mxu0 0.0
    %717 = vmatpush1.msra.mxu0 0.0
    %718 = vmatprep.subr.mxu0 0.0
    %719 = vmatpush1.msra.mxu0 0.0
    %720 = vmatprep.subr.mxu0 0.0
    %721 = vmatpush1.msra.mxu0 0.0
    %722 = vmatprep.subr.mxu0 0.0
    %723 = vmatpush1.msra.mxu0 0.0
    %724 = vmatprep.subr.mxu0 0.0
    %725 = vmatpush1.msra.mxu0 0.0
    %726 = vmatprep.subr.mxu0 0.0
    %727 = vmatpush1.msra.mxu0 0.0
    %728 = vmatprep.mubr.f32.mxu0 0.0
    %729 = vmatmul.mubr.f32.gmra.mrb[0].mxu0 %v638
    %v730 = vpop.f32.mrb[0].mxu0
    %v731 = vadd.f32 %v662, %v730
    %v732 = vpop.f32.mrb[0].mxu0
    %733 = vdwg.mxu0
    %v734 = vmax.f32 %v731, 0.0
    %v735 = vld [vmem:[#allocation5] sm:$0xff]
    %v736 = vld [vmem:[#allocation5 + $0x8] sm:$0xff]
    %v737 = vld [vmem:[#allocation5 + $0x10] sm:$0xff]
    %v738 = vld [vmem:[#allocation5 + $0x18] sm:$0xff]
    %v739 = vld [vmem:[#allocation5 + $0x20] sm:$0xff]
    %v740 = vld [vmem:[#allocation5 + $0x28] sm:$0xff]
    %v741 = vld [vmem:[#allocation5 + $0x30] sm:$0xff]
    %v742 = vld [vmem:[#allocation5 + $0x38] sm:$0xff]
    %v743 = vld [vmem:[#allocation5 + $0x40] sm:$0xff]
    %v744 = vld [vmem:[#allocation5 + $0x48] sm:$0xff]
    %v745 = vld [vmem:[#allocation5 + $0x50] sm:$0xff]
    %v746 = vld [vmem:[#allocation5 + $0x58] sm:$0xff]
    %v747 = vld [vmem:[#allocation5 + $0x60] sm:$0xff]
    %v748 = vld [vmem:[#allocation5 + $0x68] sm:$0xff]
    %v749 = vld [vmem:[#allocation5 + $0x70] sm:$0xff]
    %v750 = vld [vmem:[#allocation5 + $0x78] sm:$0xff]
    %v751 = vld [vmem:[%s7] sm:$0x1]
    %v753 = vlaneseq
    %v754 = vshrl.u32 %v753, 7
    %v755 = vsub.s32 0, %v754
    %v756 = vrot.slane %v751, %v755
    %758 = vmatprep.subr.mxu0 0.0
    %759 = vmatpush1.msra.mxu0 %v735
    %760 = vmatprep.subr.mxu0 0.0
    %761 = vmatpush1.msra.mxu0 %v736
    %762 = vmatprep.subr.mxu0 0.0
    %763 = vmatpush1.msra.mxu0 %v737
    %764 = vmatprep.subr.mxu0 0.0
    %765 = vmatpush1.msra.mxu0 %v738
    %766 = vmatprep.subr.mxu0 0.0
    %767 = vmatpush1.msra.mxu0 %v739
    %768 = vmatprep.subr.mxu0 0.0
    %769 = vmatpush1.msra.mxu0 %v740
    %770 = vmatprep.subr.mxu0 0.0
    %771 = vmatpush1.msra.mxu0 %v741
    %772 = vmatprep.subr.mxu0 0.0
    %773 = vmatpush1.msra.mxu0 %v742
    %774 = vmatprep.subr.mxu0 0.0
    %775 = vmatpush1.msra.mxu0 %v743
    %776 = vmatprep.subr.mxu0 0.0
    %777 = vmatpush1.msra.mxu0 %v744
    %778 = vmatprep.subr.mxu0 0.0
    %779 = vmatpush1.msra.mxu0 %v745
    %780 = vmatprep.subr.mxu0 0.0
    %781 = vmatpush1.msra.mxu0 %v746
    %782 = vmatprep.subr.mxu0 0.0
    %783 = vmatpush1.msra.mxu0 %v747
    %784 = vmatprep.subr.mxu0 0.0
    %785 = vmatpush1.msra.mxu0 %v748
    %786 = vmatprep.subr.mxu0 0.0
    %787 = vmatpush1.msra.mxu0 %v749
    %788 = vmatprep.subr.mxu0 0.0
    %789 = vmatpush1.msra.mxu0 %v750
    %790 = vmatprep.subr.mxu0 0.0
    %791 = vmatpush1.msra.mxu0 0.0
    %792 = vmatprep.subr.mxu0 0.0
    %793 = vmatpush1.msra.mxu0 0.0
    %794 = vmatprep.subr.mxu0 0.0
    %795 = vmatpush1.msra.mxu0 0.0
    %796 = vmatprep.subr.mxu0 0.0
    %797 = vmatpush1.msra.mxu0 0.0
    %798 = vmatprep.subr.mxu0 0.0
    %799 = vmatpush1.msra.mxu0 0.0
    %800 = vmatprep.subr.mxu0 0.0
    %801 = vmatpush1.msra.mxu0 0.0
    %802 = vmatprep.subr.mxu0 0.0
    %803 = vmatpush1.msra.mxu0 0.0
    %804 = vmatprep.subr.mxu0 0.0
    %805 = vmatpush1.msra.mxu0 0.0
    %806 = vmatprep.subr.mxu0 0.0
    %807 = vmatpush1.msra.mxu0 0.0
    %808 = vmatprep.subr.mxu0 0.0
    %809 = vmatpush1.msra.mxu0 0.0
    %810 = vmatprep.subr.mxu0 0.0
    %811 = vmatpush1.msra.mxu0 0.0
    %812 = vmatprep.subr.mxu0 0.0
    %813 = vmatpush1.msra.mxu0 0.0
    %814 = vmatprep.subr.mxu0 0.0
    %815 = vmatpush1.msra.mxu0 0.0
    %816 = vmatprep.subr.mxu0 0.0
    %817 = vmatpush1.msra.mxu0 0.0
    %818 = vmatprep.subr.mxu0 0.0
    %819 = vmatpush1.msra.mxu0 0.0
    %820 = vmatprep.subr.mxu0 0.0
    %821 = vmatpush1.msra.mxu0 0.0
    %822 = vmatprep.mubr.f32.mxu0 0.0
    %823 = vmatmul.mubr.f32.gmra.mrb[0].mxu0 %v734
    %v824 = vpop.f32.mrb[0].mxu0
    %v825 = vadd.f32 %v756, %v824
    %v826 = vpop.f32.mrb[0].mxu0
    %827 = vdwg.mxu0
    %828 = vst [vmem:[#allocation7] sm:$0xff] %v734
    %829 = vst [vmem:[%s9] sm:$0xff] %v825
    // Predicated region
    $region42: #{net_forward.1} parent=1 // pred_check
      _
    $region43: #{net_forward.1} parent=1 // pred_check_branch
      %831 = sbr.rel (0) target = $region45
    $region44: #{net_forward.1} parent=1 // pred_region
      %s833 = ssub.s32 128, 128
      %834 = vsyncadd [#allocation4], %s833
      %s836 = sshll.u32 [#allocation7], 4
      %s837 = int_to_ptr.vmem [resolvable:$true] %s836
      %839 = dma.vmem_to_hbm [thread:$0]  %s837, 128, %s8, [#allocation4]
    $region45: #{net_forward.1} parent=1 // pred_fallthru
      _
    // Predicated region
    $region46: #{net_forward.1} parent=1 // pred_check
      _
    $region47: #{net_forward.1} parent=1 // pred_check_branch
      %841 = sbr.rel (0) target = $region49
    $region48: #{net_forward.1} parent=1 // pred_region
      _
    $region49: #{net_forward.1} parent=1 // pred_fallthru
      _
    // Predicated region
    $region50: #{net_forward.1} parent=1 // pred_check
      _
    $region51: #{net_forward.1} parent=1 // pred_check_branch
      %843 = sbr.rel (0) target = $region53
    $region52: #{net_forward.1} parent=1 // pred_region
      %844 = dma.done [#allocation4], 128
    $region53: #{net_forward.1} parent=1 // pred_fallthru
      _
    // Predicated region
    $region54: #{net_forward.1} parent=1 // pred_check
      _
    $region55: #{net_forward.1} parent=1 // pred_check_branch
      %846 = sbr.rel (0) target = $region57
    $region56: #{net_forward.1} parent=1 // pred_region
      _
    $region57: #{net_forward.1} parent=1 // pred_fallthru
      _
    %847 = vsyncpa [#allocation3], 1
    %848 = vsyncpa [#allocation6], 1
    %849 = vsyncpa [#allocation4], 1

</llo_original>
